<compile_context>
chip_gen: v5e
topology: v5e:2x2
jax: 0.10.0
libtpu: 0.0.40
codegen_flags: <defaults>
</compile_context>

<pallas_src>
import jax
import jax.numpy as jnp
from jax.experimental import pallas as pl
from jax.experimental.pallas import tpu as pltpu


def _round_up(x, m):
    return (x + m - 1) // m * m


def _tensorcores_per_chip():
    # v7x has 2 TensorCores sharing HBM; the "parallel" row axis is sharded
    # across them, so keep the row-block count a multiple of 2 there.
    try:
        kind = jax.devices()[0].device_kind.lower()
        if "v7" in kind:
            return 2
    except Exception:
        pass
    return 1


def _neg_partial_likelihood_kernel(r_ref, g_ref, diag_ref, w_ref, out_ref, m_sc, l_sc):
    """One (tr, tc) tile. Grid = (row_blocks, col_blocks); columns are the reduction axis."""
    j = pl.program_id(1)

    @pl.when(j == 0)
    def _():
        m_sc[...] = jnp.full_like(m_sc, -jnp.inf)
        l_sc[...] = jnp.zeros_like(l_sc)

    g = g_ref[...]                          # (tr, tc) f32
    mask = r_ref[...] != 0                  # (tr, tc) bool; R is a 0/1 at-risk indicator

    # Online masked log-sum-exp over this column tile of the risk set:
    #   sum_j R[i,j]*exp(g[i,j]) == exp(m_i) * l_i  with running row max m_i.
    s = jnp.where(mask, g, -jnp.inf)
    m_new = jnp.maximum(m_sc[...], jnp.max(s, axis=1, keepdims=True))
    m_eff = jnp.where(m_new != -jnp.inf, m_new, 0.0)   # rows whose risk set is (so far) empty
    alpha = jnp.exp(m_sc[...] - m_eff)                 # == 0 while m_sc is still -inf
    p = jnp.exp(s - m_eff)                             # masked entries: exp(-inf) == 0
    l_sc[...] = alpha * l_sc[...] + jnp.sum(p, axis=1, keepdims=True)
    m_sc[...] = m_new

    @pl.when(j == pl.num_programs(1) - 1)
    def _():
        w = w_ref[...]                                 # (tr, 1) = (2 - eps) * Delta
        lse = m_sc[...] + jnp.log(l_sc[...])           # log sum_j R*exp(g)
        # w == 0 rows (including padded rows) contribute exactly 0.
        out_ref[...] = jnp.where(w != 0, (diag_ref[...] - lse) * w, 0.0)


def my_loss_pallas(R, g_value, epsilon, Delta, *, tile_rows=None, tile_cols=None):
    """Computes -partial_likelihood(data, g_value).

    R, g_value: (n, n); epsilon, Delta: n-element vectors (any shape with n elems).
    R may be f32 (converted to an int8 mask here) or an already-cached int8/bool
    mask (preferred when R is static across training steps).
    """
    n = g_value.shape[0]
    g = jnp.asarray(g_value, jnp.float32).reshape(n, n)

    # Diagonal hoisted out of the kernel: n-element strided read, negligible vs n^2.
    diag = jnp.diagonal(g).reshape(n, 1).astype(jnp.float32)

    # At-risk indicator as int8 (5n^2 instead of 8n^2 HBM bytes in-kernel).
    # If R is static across steps, cache this conversion outside the jitted loss.
    r = jnp.asarray(R).reshape(n, n)
    if not (jnp.issubdtype(r.dtype, jnp.integer) or r.dtype == jnp.bool_):
        r = (r != 0)
    r = r.astype(jnp.int8)

    # Precombine the per-row weight once (one lane-sparse vector instead of two).
    w = ((2.0 - jnp.asarray(epsilon, jnp.float32).reshape(n))
         * jnp.asarray(Delta, jnp.float32).reshape(n)).reshape(n, 1)

    # Rectangular tiles: small row dim, wide column dim.  256 x 2048 f32+int8
    # double-buffered is ~5 MiB of VMEM plus ~0.9 MiB of lane-padded (tr,1)
    # buffers -> fits every generation's scoped default with room to spare.
    tr = tile_rows if tile_rows is not None else min(256, _round_up(n, 128))
    tc = tile_cols if tile_cols is not None else min(2048, _round_up(n, 128))
    assert tr % 128 == 0 and tc % 128 == 0, "tile dims must be multiples of 128"

    pr = _round_up(n, tr)
    pc = _round_up(n, tc)
    # On v7x, keep the row-block count a multiple of the TensorCores per chip so
    # the parallel row axis shards evenly (padded rows have w == 0 -> contribute 0).
    cores = _tensorcores_per_chip()
    rb = pr // tr
    if rb % cores != 0:
        rb = _round_up(rb, cores)
        pr = rb * tr

    if pr != n or pc != n:
        g = jnp.pad(g, ((0, pr - n), (0, pc - n)))
        r = jnp.pad(r, ((0, pr - n), (0, pc - n)))
        w = jnp.pad(w, ((0, pr - n), (0, 0)))
        diag = jnp.pad(diag, ((0, pr - n), (0, 0)))

    grid = (pr // tr, pc // tc)
    terms = pl.pallas_call(
        _neg_partial_likelihood_kernel,
        out_shape=jax.ShapeDtypeStruct((pr, 1), jnp.float32),
        grid_spec=pltpu.PrefetchScalarGridSpec(
            num_scalar_prefetch=0,
            grid=grid,
            in_specs=[
                pl.BlockSpec((tr, tc), lambda i, j: (i, j)),   # R (int8 indicator)
                pl.BlockSpec((tr, tc), lambda i, j: (i, j)),   # g_value
                pl.BlockSpec((tr, 1), lambda i, j: (i, 0)),    # diag(g)
                pl.BlockSpec((tr, 1), lambda i, j: (i, 0)),    # w = (2 - eps) * Delta
            ],
            out_specs=pl.BlockSpec((tr, 1), lambda i, j: (i, 0)),
            scratch_shapes=[
                pltpu.VMEM((tr, 1), jnp.float32),   # m: running row max
                pltpu.VMEM((tr, 1), jnp.float32),   # l: running scaled sum
            ],
        ),
        compiler_params=pltpu.CompilerParams(
            dimension_semantics=("parallel", "arbitrary"),
            vmem_limit_bytes=32 * 1024 * 1024,
        ),
    )(r, g, diag, w)

    # Tiny final reduction left to XLA; per-row outputs keep the parallel row
    # axis race-free across TensorCores.
    return -jnp.sum(terms[:n, 0])


def my_loss_ref(R, g_value, epsilon, Delta):
    n = g_value.shape[0]
    R = jnp.asarray(R, jnp.float32).reshape(n, n)
    g = jnp.asarray(g_value, jnp.float32).reshape(n, n)
    eps = jnp.asarray(epsilon, jnp.float32).reshape(n)
    delta = jnp.asarray(Delta, jnp.float32).reshape(n)
    l = ((jnp.diag(g) - jnp.log(jnp.sum(R * jnp.exp(g), axis=1)))
         * (2.0 - eps) * delta).sum()
    return -l


def _make_inputs(key, n):
    k1, _, k3, k4 = jax.random.split(key, 4)
    g_value = jax.random.normal(k1, (n, n), dtype=jnp.float32) * 0.5
    ids = jnp.arange(n)
    R = (ids[None, :] >= ids[:, None]).astype(jnp.float32)   # at-risk set, ones on diag
    epsilon = jax.random.bernoulli(k3, 0.5, (n,)).astype(jnp.float32)
    Delta = jax.random.bernoulli(k4, 0.7, (n,)).astype(jnp.float32)
    return R, g_value, epsilon, Delta


if __name__ == "__main__":
    key = jax.random.PRNGKey(0)

    # Small case (single tile after padding to 128).
    n = 16
    R, g_value, epsilon, Delta = _make_inputs(key, n)
    loss = my_loss_pallas(R, g_value, epsilon, Delta)
    jax.block_until_ready(loss)
    ref = my_loss_ref(R, g_value, epsilon, Delta)
    assert jnp.allclose(loss, ref, rtol=1e-5, atol=1e-5), (loss, ref)

    # Exercise the multi-block path (grid >= 2x2, padded tail, rectangular tiles,
    # multi-step online LSE along the column axis) and the pre-cached int8 mask path.
    n2 = 200
    R2, g2, eps2, d2 = _make_inputs(jax.random.PRNGKey(1), n2)
    R2_mask = (R2 != 0).astype(jnp.int8)   # cached mask: no per-call conversion pass
    loss2 = my_loss_pallas(R2_mask, g2, eps2, d2, tile_rows=128, tile_cols=128)
    jax.block_until_ready(loss2)
    ref2 = my_loss_ref(R2, g2, eps2, d2)
    assert jnp.allclose(loss2, ref2, rtol=1e-5, atol=1e-4), (loss2, ref2)

    print("KERNEL_OK")
</pallas_src>

<mosaic_0001>
module attributes {stable_mosaic.version = 11 : i64} {
  func.func @_neg_partial_likelihood_kernel(%arg0: i32, %arg1: i32, %arg2: memref<128x128xi8, #tpu.memory_space<vmem>>, %arg3: memref<128x128xf32, #tpu.memory_space<vmem>>, %arg4: memref<128x1xf32, #tpu.memory_space<vmem>>, %arg5: memref<128x1xf32, #tpu.memory_space<vmem>>, %arg6: memref<128x1xf32, #tpu.memory_space<vmem>>, %arg7: memref<128x1xf32, #tpu.memory_space<vmem>>, %arg8: memref<128x1xf32, #tpu.memory_space<vmem>>) attributes {dimension_semantics = [#tpu.dimension_semantics<parallel>, #tpu.dimension_semantics<arbitrary>], iteration_bounds = array<i64: 1, 1>, scalar_prefetch = 0 : i64, scratch_operands = 2 : i64, tpu.core_type = #tpu.core_type<tc>, window_params = [{transform_indices = @transform_0, window_bounds = array<i64: 128, 128>}, {transform_indices = @transform_1, window_bounds = array<i64: 128, 128>}, {transform_indices = @transform_2, window_bounds = array<i64: 128, 1>}, {transform_indices = @transform_3, window_bounds = array<i64: 128, 1>}, {transform_indices = @transform_4, window_bounds = array<i64: 128, 1>}]} {
    %c0_i32 = arith.constant 0 : i32
    %0 = arith.cmpi eq, %arg1, %c0_i32 : i32
    %1 = arith.extui %0 : i1 to i32
    %c0_i32_0 = arith.constant 0 : i32
    %2 = arith.cmpi ne, %1, %c0_i32_0 : i32
    scf.if %2 {
      %cst_20 = arith.constant 0xFF800000 : f32
      %33 = vector.broadcast %cst_20 : f32 to vector<128x1xf32>
      %c0_21 = arith.constant 0 : index
      %c0_22 = arith.constant 0 : index
      %34 = vector.load %arg7[%c0_21, %c0_22] : memref<128x1xf32, #tpu.memory_space<vmem>>, vector<128x1xf32>
      tpu.vector_store %arg7[%c0_21, %c0_22], %33 {strides = array<i32>} : memref<128x1xf32, #tpu.memory_space<vmem>>, vector<128x1xf32>,
      %cst_23 = arith.constant 0.000000e+00 : f32
      %35 = vector.broadcast %cst_23 : f32 to vector<128x1xf32>
      %c0_24 = arith.constant 0 : index
      %c0_25 = arith.constant 0 : index
      %36 = vector.load %arg8[%c0_24, %c0_25] : memref<128x1xf32, #tpu.memory_space<vmem>>, vector<128x1xf32>
      tpu.vector_store %arg8[%c0_24, %c0_25], %35 {strides = array<i32>} : memref<128x1xf32, #tpu.memory_space<vmem>>, vector<128x1xf32>,
    } else {
    }
    %c0 = arith.constant 0 : index
    %c0_1 = arith.constant 0 : index
    %3 = vector.load %arg3[%c0, %c0_1] : memref<128x128xf32, #tpu.memory_space<vmem>>, vector<128x128xf32>
    %c0_2 = arith.constant 0 : index
    %c0_3 = arith.constant 0 : index
    %4 = vector.load %arg2[%c0_2, %c0_3] : memref<128x128xi8, #tpu.memory_space<vmem>>, vector<128x128xi8>
    %c0_i8 = arith.constant 0 : i8
    %5 = vector.broadcast %c0_i8 : i8 to vector<128x128xi8>
    %6 = arith.cmpi ne, %4, %5 : vector<128x128xi8>
    %cst = arith.constant 0xFF800000 : f32
    %7 = vector.broadcast %cst : f32 to vector<128x128xf32>
    %8 = arith.select %6, %3, %7 : vector<128x128xi1>, vector<128x128xf32>
    %c0_4 = arith.constant 0 : index
    %c0_5 = arith.constant 0 : index
    %9 = vector.load %arg7[%c0_4, %c0_5] : memref<128x1xf32, #tpu.memory_space<vmem>>, vector<128x1xf32>
    %cst_6 = arith.constant dense<0xFF800000> : vector<128xf32>
    %10 = vector.multi_reduction <maximumf>, %8, %cst_6 [1] : vector<128x128xf32> to vector<128xf32>
    %11 = vector.shape_cast %10 : vector<128xf32> to vector<128x1xf32>
    %12 = arith.maximumf %9, %11 : vector<128x1xf32>
    %cst_7 = arith.constant 0xFF800000 : f32
    %13 = vector.broadcast %cst_7 : f32 to vector<128x1xf32>
    %14 = arith.cmpf one, %12, %13 : vector<128x1xf32>
    %cst_8 = arith.constant 0.000000e+00 : f32
    %15 = vector.broadcast %cst_8 : f32 to vector<128x1xf32>
    %16 = arith.select %14, %12, %15 : vector<128x1xi1>, vector<128x1xf32>
    %c0_9 = arith.constant 0 : index
    %c0_10 = arith.constant 0 : index
    %17 = vector.load %arg7[%c0_9, %c0_10] : memref<128x1xf32, #tpu.memory_space<vmem>>, vector<128x1xf32>
    %18 = arith.subf %17, %16 : vector<128x1xf32>
    %19 = math.exp %18 : vector<128x1xf32>
    %20 = vector.broadcast %16 : vector<128x1xf32> to vector<128x128xf32>
    %21 = arith.subf %8, %20 : vector<128x128xf32>
    %22 = math.exp %21 : vector<128x128xf32>
    %c0_11 = arith.constant 0 : index
    %c0_12 = arith.constant 0 : index
    %23 = vector.load %arg8[%c0_11, %c0_12] : memref<128x1xf32, #tpu.memory_space<vmem>>, vector<128x1xf32>
    %24 = arith.mulf %19, %23 : vector<128x1xf32>
    %cst_13 = arith.constant dense<0.000000e+00> : vector<128xf32>
    %25 = vector.multi_reduction <add>, %22, %cst_13 [1] : vector<128x128xf32> to vector<128xf32>
    %26 = vector.shape_cast %25 : vector<128xf32> to vector<128x1xf32>
    %27 = arith.addf %24, %26 : vector<128x1xf32>
    %c0_14 = arith.constant 0 : index
    %c0_15 = arith.constant 0 : index
    %28 = vector.load %arg8[%c0_14, %c0_15] : memref<128x1xf32, #tpu.memory_space<vmem>>, vector<128x1xf32>
    tpu.vector_store %arg8[%c0_14, %c0_15], %27 {strides = array<i32>} : memref<128x1xf32, #tpu.memory_space<vmem>>, vector<128x1xf32>,
    %c0_16 = arith.constant 0 : index
    %c0_17 = arith.constant 0 : index
    %29 = vector.load %arg7[%c0_16, %c0_17] : memref<128x1xf32, #tpu.memory_space<vmem>>, vector<128x1xf32>
    tpu.vector_store %arg7[%c0_16, %c0_17], %12 {strides = array<i32>} : memref<128x1xf32, #tpu.memory_space<vmem>>, vector<128x1xf32>,
    %c0_i32_18 = arith.constant 0 : i32
    %30 = arith.cmpi eq, %arg1, %c0_i32_18 : i32
    %31 = arith.extui %30 : i1 to i32
    %c0_i32_19 = arith.constant 0 : i32
    %32 = arith.cmpi ne, %31, %c0_i32_19 : i32
    scf.if %32 {
      %c0_20 = arith.constant 0 : index
      %c0_21 = arith.constant 0 : index
      %33 = vector.load %arg5[%c0_20, %c0_21] : memref<128x1xf32, #tpu.memory_space<vmem>>, vector<128x1xf32>
      %c0_22 = arith.constant 0 : index
      %c0_23 = arith.constant 0 : index
      %34 = vector.load %arg7[%c0_22, %c0_23] : memref<128x1xf32, #tpu.memory_space<vmem>>, vector<128x1xf32>
      %c0_24 = arith.constant 0 : index
      %c0_25 = arith.constant 0 : index
      %35 = vector.load %arg8[%c0_24, %c0_25] : memref<128x1xf32, #tpu.memory_space<vmem>>, vector<128x1xf32>
      %36 = math.log %35 : vector<128x1xf32>
      %37 = arith.addf %34, %36 : vector<128x1xf32>
      %cst_26 = arith.constant 0.000000e+00 : f32
      %38 = vector.broadcast %cst_26 : f32 to vector<128x1xf32>
      %39 = arith.cmpf one, %33, %38 : vector<128x1xf32>
      %c0_27 = arith.constant 0 : index
      %c0_28 = arith.constant 0 : index
      %40 = vector.load %arg4[%c0_27, %c0_28] : memref<128x1xf32, #tpu.memory_space<vmem>>, vector<128x1xf32>
      %41 = arith.subf %40, %37 : vector<128x1xf32>
      %42 = arith.mulf %41, %33 : vector<128x1xf32>
      %cst_29 = arith.constant 0.000000e+00 : f32
      %43 = vector.broadcast %cst_29 : f32 to vector<128x1xf32>
      %44 = arith.select %39, %42, %43 : vector<128x1xi1>, vector<128x1xf32>
      %c0_30 = arith.constant 0 : index
      %c0_31 = arith.constant 0 : index
      %45 = vector.load %arg6[%c0_30, %c0_31] : memref<128x1xf32, #tpu.memory_space<vmem>>, vector<128x1xf32>
      tpu.vector_store %arg6[%c0_30, %c0_31], %44 {strides = array<i32>} : memref<128x1xf32, #tpu.memory_space<vmem>>, vector<128x1xf32>,
    } else {
    }
    return
  }
  func.func @transform_0(%arg0: i32, %arg1: i32) -> (i32, i32) {
    %c0_i32 = arith.constant 0 : i32
    return %arg0, %arg1 : i32, i32
  }
  func.func @transform_1(%arg0: i32, %arg1: i32) -> (i32, i32) {
    %c0_i32 = arith.constant 0 : i32
    return %arg0, %arg1 : i32, i32
  }
  func.func @transform_2(%arg0: i32, %arg1: i32) -> (i32, i32) {
    %c0_i32 = arith.constant 0 : i32
    %c0_i32_0 = arith.constant 0 : i32
    return %arg0, %c0_i32 : i32, i32
  }
  func.func @transform_3(%arg0: i32, %arg1: i32) -> (i32, i32) {
    %c0_i32 = arith.constant 0 : i32
    %c0_i32_0 = arith.constant 0 : i32
    return %arg0, %c0_i32 : i32, i32
  }
  func.func @transform_4(%arg0: i32, %arg1: i32) -> (i32, i32) {
    %c0_i32 = arith.constant 0 : i32
    %c0_i32_0 = arith.constant 0 : i32
    return %arg0, %c0_i32 : i32, i32
  }
}

</mosaic_0001>

<llo_original>
// kernel: tpu_custom_call.1
$region0: #{tpu_custom_call.1}
  #allocation0 [shape = 'u32[]', space=smem, size = 0x4, offset = 0x4, fixed_abs, tag = 'smem constant byte address 0x4 - core index']
  #allocation1 [shape = 'u32[72,128]{1,0:T(1,128)}', space=vmem, size = 0x9000, scoped, tag = 'internal scratch']
  #allocation2 [shape = 'f32[128,1]{1,0:T(8,128)}', space=vmem, size = 0x10000, scoped, tag = 'scratch operand']
  #allocation3 [shape = 'f32[128,1]{1,0:T(8,128)}', space=vmem, size = 0x10000, scoped, tag = 'scratch operand']
  %s0 = inlined_call_operand.vmem [shape: s8[128,128], index: 0, kind: input, shape index: {}]
  %s1 = inlined_call_operand.vmem [shape: f32[128,128], index: 1, kind: input, shape index: {}]
  %s2 = inlined_call_operand.vmem [shape: f32[128,1], index: 2, kind: input, shape index: {}]
  %s3 = inlined_call_operand.vmem [shape: f32[128,1], index: 3, kind: input, shape index: {}]
  %s4 = inlined_call_operand.vmem [shape: f32[128,1], index: 4, kind: output, shape index: {}]
  %s5 = sld [smem:[#allocation0]]
  $region34: #{tpu_custom_call.1} parent=0
    _
  %s7 = ssub.s32 1, %s5
  %s8 = scalar_select 0, %s7, %s5
  // Predicated region
  $region2: #{tpu_custom_call.1} parent=0 // pred_check
    _
  $region3: #{tpu_custom_call.1} parent=0 // pred_check_branch
    %10 = sbr.rel (0) target = $region5
  $region4: #{tpu_custom_call.1} parent=0 // pred_region
    _
  $region5: #{tpu_custom_call.1} parent=0 // pred_fallthru
    _
  // Predicated region
  $region6: #{tpu_custom_call.1} parent=0 // pred_check
    _
  $region7: #{tpu_custom_call.1} parent=0 // pred_check_branch
    %12 = sbr.rel (0) target = $region9
  $region8: #{tpu_custom_call.1} parent=0 // pred_region
    _
  $region9: #{tpu_custom_call.1} parent=0 // pred_fallthru
    _
  // Predicated region
  $region10: #{tpu_custom_call.1} parent=0 // pred_check
    _
  $region11: #{tpu_custom_call.1} parent=0 // pred_check_branch
    %14 = sbr.rel (0) target = $region13
  $region12: #{tpu_custom_call.1} parent=0 // pred_region
    _
  $region13: #{tpu_custom_call.1} parent=0 // pred_fallthru
    _
  // Predicated region
  $region14: #{tpu_custom_call.1} parent=0 // pred_check
    _
  $region15: #{tpu_custom_call.1} parent=0 // pred_check_branch
    %16 = sbr.rel (0) target = $region17
  $region16: #{tpu_custom_call.1} parent=0 // pred_region
    _
  $region17: #{tpu_custom_call.1} parent=0 // pred_fallthru
    _
  %p19 = scmp.eq.s32.totalorder 0, 0
  // Predicated region
  $region18: #{tpu_custom_call.1} parent=0 // pred_check
    %p20 = pneg %p19
  $region19: #{tpu_custom_call.1} parent=0 // pred_check_branch
    %22 = sbr.rel (%p20) target = $region21
  $region20: #{tpu_custom_call.1} parent=0 // pred_region
    %vm23 = vcmask 7168
    %24 = vst.msk [vmem:[#allocation2] sm:$0xff] %vm23, -inf
    %25 = vst.msk [vmem:[#allocation2 + $0x8] sm:$0xff] %vm23, -inf
    %26 = vst.msk [vmem:[#allocation2 + $0x10] sm:$0xff] %vm23, -inf
    %27 = vst.msk [vmem:[#allocation2 + $0x18] sm:$0xff] %vm23, -inf
    %28 = vst.msk [vmem:[#allocation2 + $0x20] sm:$0xff] %vm23, -inf
    %29 = vst.msk [vmem:[#allocation2 + $0x28] sm:$0xff] %vm23, -inf
    %30 = vst.msk [vmem:[#allocation2 + $0x30] sm:$0xff] %vm23, -inf
    %31 = vst.msk [vmem:[#allocation2 + $0x38] sm:$0xff] %vm23, -inf
    %32 = vst.msk [vmem:[#allocation2 + $0x40] sm:$0xff] %vm23, -inf
    %33 = vst.msk [vmem:[#allocation2 + $0x48] sm:$0xff] %vm23, -inf
    %34 = vst.msk [vmem:[#allocation2 + $0x50] sm:$0xff] %vm23, -inf
    %35 = vst.msk [vmem:[#allocation2 + $0x58] sm:$0xff] %vm23, -inf
    %36 = vst.msk [vmem:[#allocation2 + $0x60] sm:$0xff] %vm23, -inf
    %37 = vst.msk [vmem:[#allocation2 + $0x68] sm:$0xff] %vm23, -inf
    %38 = vst.msk [vmem:[#allocation2 + $0x70] sm:$0xff] %vm23, -inf
    %39 = vst.msk [vmem:[#allocation2 + $0x78] sm:$0xff] %vm23, -inf
    %40 = vst.msk [vmem:[#allocation3] sm:$0xff] %vm23, 0.0
    %41 = vst.msk [vmem:[#allocation3 + $0x8] sm:$0xff] %vm23, 0.0
    %42 = vst.msk [vmem:[#allocation3 + $0x10] sm:$0xff] %vm23, 0.0
    %43 = vst.msk [vmem:[#allocation3 + $0x18] sm:$0xff] %vm23, 0.0
    %44 = vst.msk [vmem:[#allocation3 + $0x20] sm:$0xff] %vm23, 0.0
    %45 = vst.msk [vmem:[#allocation3 + $0x28] sm:$0xff] %vm23, 0.0
    %46 = vst.msk [vmem:[#allocation3 + $0x30] sm:$0xff] %vm23, 0.0
    %47 = vst.msk [vmem:[#allocation3 + $0x38] sm:$0xff] %vm23, 0.0
    %48 = vst.msk [vmem:[#allocation3 + $0x40] sm:$0xff] %vm23, 0.0
    %49 = vst.msk [vmem:[#allocation3 + $0x48] sm:$0xff] %vm23, 0.0
    %50 = vst.msk [vmem:[#allocation3 + $0x50] sm:$0xff] %vm23, 0.0
    %51 = vst.msk [vmem:[#allocation3 + $0x58] sm:$0xff] %vm23, 0.0
    %52 = vst.msk [vmem:[#allocation3 + $0x60] sm:$0xff] %vm23, 0.0
    %53 = vst.msk [vmem:[#allocation3 + $0x68] sm:$0xff] %vm23, 0.0
    %54 = vst.msk [vmem:[#allocation3 + $0x70] sm:$0xff] %vm23, 0.0
    %55 = vst.msk [vmem:[#allocation3 + $0x78] sm:$0xff] %vm23, 0.0
  $region21: #{tpu_custom_call.1} parent=0 // pred_fallthru
    _
  %v56 = vld [vmem:[%s1] sm:$0xff]
  %v57 = vld [vmem:[%s1 + $0x8] sm:$0xff]
  %v58 = vld [vmem:[%s1 + $0x10] sm:$0xff]
  %v59 = vld [vmem:[%s1 + $0x18] sm:$0xff]
  %v60 = vld [vmem:[%s1 + $0x20] sm:$0xff]
  %v61 = vld [vmem:[%s1 + $0x28] sm:$0xff]
  %v62 = vld [vmem:[%s1 + $0x30] sm:$0xff]
  %v63 = vld [vmem:[%s1 + $0x38] sm:$0xff]
  %v64 = vld [vmem:[%s1 + $0x40] sm:$0xff]
  %v65 = vld [vmem:[%s1 + $0x48] sm:$0xff]
  %v66 = vld [vmem:[%s1 + $0x50] sm:$0xff]
  %v67 = vld [vmem:[%s1 + $0x58] sm:$0xff]
  %v68 = vld [vmem:[%s1 + $0x60] sm:$0xff]
  %v69 = vld [vmem:[%s1 + $0x68] sm:$0xff]
  %v70 = vld [vmem:[%s1 + $0x70] sm:$0xff]
  %v71 = vld [vmem:[%s1 + $0x78] sm:$0xff]
  %v72 = vld [vmem:[%s0] sm:$0xff]
  %v73 = vld [vmem:[%s0 + $0x8] sm:$0xff]
  %v74 = vld [vmem:[%s0 + $0x10] sm:$0xff]
  %v75 = vld [vmem:[%s0 + $0x18] sm:$0xff]
  %vm76 = vnez %v72
  %vm77 = vnez %v73
  %vm78 = vnez %v74
  %vm79 = vnez %v75
  %v80 = vsel %vm76, 16843009, 0
  %v81 = vsel %vm77, 16843009, 0
  %v82 = vsel %vm78, 16843009, 0
  %v83 = vsel %vm79, 16843009, 0
  %v84 = vunpack.c.0.s8 %v80
  %v85 = vunpack.c.1.s8 %v80
  %v86 = vunpack.c.2.s8 %v80
  %v87 = vunpack.c.3.s8 %v80
  %v88 = vunpack.c.0.s8 %v81
  %v89 = vunpack.c.1.s8 %v81
  %v90 = vunpack.c.2.s8 %v81
  %v91 = vunpack.c.3.s8 %v81
  %v92 = vunpack.c.0.s8 %v82
  %v93 = vunpack.c.1.s8 %v82
  %v94 = vunpack.c.2.s8 %v82
  %v95 = vunpack.c.3.s8 %v82
  %v96 = vunpack.c.0.s8 %v83
  %v97 = vunpack.c.1.s8 %v83
  %v98 = vunpack.c.2.s8 %v83
  %v99 = vunpack.c.3.s8 %v83
  %v100 = vpack.c.b16 %v84, %v84
  %v101 = vpack.c.b8 %v100, %v100
  %v102 = vpack.c.b16 %v85, %v85
  %v103 = vpack.c.b8 %v102, %v102
  %v104 = vpack.c.b16 %v86, %v86
  %v105 = vpack.c.b8 %v104, %v104
  %v106 = vpack.c.b16 %v87, %v87
  %v107 = vpack.c.b8 %v106, %v106
  %v108 = vpack.c.b16 %v88, %v88
  %v109 = vpack.c.b8 %v108, %v108
  %v110 = vpack.c.b16 %v89, %v89
  %v111 = vpack.c.b8 %v110, %v110
  %v112 = vpack.c.b16 %v90, %v90
  %v113 = vpack.c.b8 %v112, %v112
  %v114 = vpack.c.b16 %v91, %v91
  %v115 = vpack.c.b8 %v114, %v114
  %v116 = vpack.c.b16 %v92, %v92
  %v117 = vpack.c.b8 %v116, %v116
  %v118 = vpack.c.b16 %v93, %v93
  %v119 = vpack.c.b8 %v118, %v118
  %v120 = vpack.c.b16 %v94, %v94
  %v121 = vpack.c.b8 %v120, %v120
  %v122 = vpack.c.b16 %v95, %v95
  %v123 = vpack.c.b8 %v122, %v122
  %v124 = vpack.c.b16 %v96, %v96
  %v125 = vpack.c.b8 %v124, %v124
  %v126 = vpack.c.b16 %v97, %v97
  %v127 = vpack.c.b8 %v126, %v126
  %v128 = vpack.c.b16 %v98, %v98
  %v129 = vpack.c.b8 %v128, %v128
  %v130 = vpack.c.b16 %v99, %v99
  %v131 = vpack.c.b8 %v130, %v130
  %vm132 = vnez %v101
  %vm133 = vnez %v103
  %vm134 = vnez %v105
  %vm135 = vnez %v107
  %vm136 = vnez %v109
  %vm137 = vnez %v111
  %vm138 = vnez %v113
  %vm139 = vnez %v115
  %vm140 = vnez %v117
  %vm141 = vnez %v119
  %vm142 = vnez %v121
  %vm143 = vnez %v123
  %vm144 = vnez %v125
  %vm145 = vnez %v127
  %vm146 = vnez %v129
  %vm147 = vnez %v131
  %v148 = vsel %vm132, 16843009, 0
  %v149 = vsel %vm133, 16843009, 0
  %v150 = vsel %vm134, 16843009, 0
  %v151 = vsel %vm135, 16843009, 0
  %v152 = vsel %vm136, 16843009, 0
  %v153 = vsel %vm137, 16843009, 0
  %v154 = vsel %vm138, 16843009, 0
  %v155 = vsel %vm139, 16843009, 0
  %v156 = vsel %vm140, 16843009, 0
  %v157 = vsel %vm141, 16843009, 0
  %v158 = vsel %vm142, 16843009, 0
  %v159 = vsel %vm143, 16843009, 0
  %v160 = vsel %vm144, 16843009, 0
  %v161 = vsel %vm145, 16843009, 0
  %v162 = vsel %vm146, 16843009, 0
  %v163 = vsel %vm147, 16843009, 0
  %v164 = vunpack.c.0.s8 %v148
  %v165 = vunpack.c.0.s8 %v149
  %v166 = vunpack.c.0.s8 %v150
  %v167 = vunpack.c.0.s8 %v151
  %v168 = vunpack.c.0.s8 %v152
  %v169 = vunpack.c.0.s8 %v153
  %v170 = vunpack.c.0.s8 %v154
  %v171 = vunpack.c.0.s8 %v155
  %v172 = vunpack.c.0.s8 %v156
  %v173 = vunpack.c.0.s8 %v157
  %v174 = vunpack.c.0.s8 %v158
  %v175 = vunpack.c.0.s8 %v159
  %v176 = vunpack.c.0.s8 %v160
  %v177 = vunpack.c.0.s8 %v161
  %v178 = vunpack.c.0.s8 %v162
  %v179 = vunpack.c.0.s8 %v163
  %vm180 = vcmp.ne.s32.totalorder %v164, 0
  %vm181 = vcmp.ne.s32.totalorder %v165, 0
  %vm182 = vcmp.ne.s32.totalorder %v166, 0
  %vm183 = vcmp.ne.s32.totalorder %v167, 0
  %vm184 = vcmp.ne.s32.totalorder %v168, 0
  %vm185 = vcmp.ne.s32.totalorder %v169, 0
  %vm186 = vcmp.ne.s32.totalorder %v170, 0
  %vm187 = vcmp.ne.s32.totalorder %v171, 0
  %vm188 = vcmp.ne.s32.totalorder %v172, 0
  %vm189 = vcmp.ne.s32.totalorder %v173, 0
  %vm190 = vcmp.ne.s32.totalorder %v174, 0
  %vm191 = vcmp.ne.s32.totalorder %v175, 0
  %vm192 = vcmp.ne.s32.totalorder %v176, 0
  %vm193 = vcmp.ne.s32.totalorder %v177, 0
  %vm194 = vcmp.ne.s32.totalorder %v178, 0
  %vm195 = vcmp.ne.s32.totalorder %v179, 0
  %v196 = vsel %vm180, %v56, -inf
  %v197 = vsel %vm181, %v57, -inf
  %v198 = vsel %vm182, %v58, -inf
  %v199 = vsel %vm183, %v59, -inf
  %v200 = vsel %vm184, %v60, -inf
  %v201 = vsel %vm185, %v61, -inf
  %v202 = vsel %vm186, %v62, -inf
  %v203 = vsel %vm187, %v63, -inf
  %v204 = vsel %vm188, %v64, -inf
  %v205 = vsel %vm189, %v65, -inf
  %v206 = vsel %vm190, %v66, -inf
  %v207 = vsel %vm191, %v67, -inf
  %v208 = vsel %vm192, %v68, -inf
  %v209 = vsel %vm193, %v69, -inf
  %v210 = vsel %vm194, %v70, -inf
  %v211 = vsel %vm195, %v71, -inf
  %v212 = vld [vmem:[#allocation2] sm:$0xff]
  %v213 = vld [vmem:[#allocation2 + $0x8] sm:$0xff]
  %v214 = vld [vmem:[#allocation2 + $0x10] sm:$0xff]
  %v215 = vld [vmem:[#allocation2 + $0x18] sm:$0xff]
  %v216 = vld [vmem:[#allocation2 + $0x20] sm:$0xff]
  %v217 = vld [vmem:[#allocation2 + $0x28] sm:$0xff]
  %v218 = vld [vmem:[#allocation2 + $0x30] sm:$0xff]
  %v219 = vld [vmem:[#allocation2 + $0x38] sm:$0xff]
  %v220 = vld [vmem:[#allocation2 + $0x40] sm:$0xff]
  %v221 = vld [vmem:[#allocation2 + $0x48] sm:$0xff]
  %v222 = vld [vmem:[#allocation2 + $0x50] sm:$0xff]
  %v223 = vld [vmem:[#allocation2 + $0x58] sm:$0xff]
  %v224 = vld [vmem:[#allocation2 + $0x60] sm:$0xff]
  %v225 = vld [vmem:[#allocation2 + $0x68] sm:$0xff]
  %v226 = vld [vmem:[#allocation2 + $0x70] sm:$0xff]
  %v227 = vld [vmem:[#allocation2 + $0x78] sm:$0xff]
  %228 = vmax.xlane.f32.xlu0 %v196
  %v229 = vpop.xlane.xlu0 %228
  %230 = vmax.xlane.f32.xlu0 %v197
  %v231 = vpop.xlane.xlu0 %230
  %232 = vmax.xlane.f32.xlu0 %v198
  %v233 = vpop.xlane.xlu0 %232
  %234 = vmax.xlane.f32.xlu0 %v199
  %v235 = vpop.xlane.xlu0 %234
  %236 = vmax.xlane.f32.xlu0 %v200
  %v237 = vpop.xlane.xlu0 %236
  %238 = vmax.xlane.f32.xlu0 %v201
  %v239 = vpop.xlane.xlu0 %238
  %240 = vmax.xlane.f32.xlu0 %v202
  %v241 = vpop.xlane.xlu0 %240
  %242 = vmax.xlane.f32.xlu0 %v203
  %v243 = vpop.xlane.xlu0 %242
  %244 = vmax.xlane.f32.xlu0 %v204
  %v245 = vpop.xlane.xlu0 %244
  %246 = vmax.xlane.f32.xlu0 %v205
  %v247 = vpop.xlane.xlu0 %246
  %248 = vmax.xlane.f32.xlu0 %v206
  %v249 = vpop.xlane.xlu0 %248
  %250 = vmax.xlane.f32.xlu0 %v207
  %v251 = vpop.xlane.xlu0 %250
  %252 = vmax.xlane.f32.xlu0 %v208
  %v253 = vpop.xlane.xlu0 %252
  %254 = vmax.xlane.f32.xlu0 %v209
  %v255 = vpop.xlane.xlu0 %254
  %256 = vmax.xlane.f32.xlu0 %v210
  %v257 = vpop.xlane.xlu0 %256
  %258 = vmax.xlane.f32.xlu0 %v211
  %v259 = vpop.xlane.xlu0 %258
  %v260 = vmax.f32 %v212, %v229
  %v261 = vmax.f32 %v213, %v231
  %v262 = vmax.f32 %v214, %v233
  %v263 = vmax.f32 %v215, %v235
  %v264 = vmax.f32 %v216, %v237
  %v265 = vmax.f32 %v217, %v239
  %v266 = vmax.f32 %v218, %v241
  %v267 = vmax.f32 %v219, %v243
  %v268 = vmax.f32 %v220, %v245
  %v269 = vmax.f32 %v221, %v247
  %v270 = vmax.f32 %v222, %v249
  %v271 = vmax.f32 %v223, %v251
  %v272 = vmax.f32 %v224, %v253
  %v273 = vmax.f32 %v225, %v255
  %v274 = vmax.f32 %v226, %v257
  %v275 = vmax.f32 %v227, %v259
  %vm276 = vcmp.ne.f32.partialorder %v260, -inf
  %vm277 = vcmp.ne.f32.partialorder %v261, -inf
  %vm278 = vcmp.ne.f32.partialorder %v262, -inf
  %vm279 = vcmp.ne.f32.partialorder %v263, -inf
  %vm280 = vcmp.ne.f32.partialorder %v264, -inf
  %vm281 = vcmp.ne.f32.partialorder %v265, -inf
  %vm282 = vcmp.ne.f32.partialorder %v266, -inf
  %vm283 = vcmp.ne.f32.partialorder %v267, -inf
  %vm284 = vcmp.ne.f32.partialorder %v268, -inf
  %vm285 = vcmp.ne.f32.partialorder %v269, -inf
  %vm286 = vcmp.ne.f32.partialorder %v270, -inf
  %vm287 = vcmp.ne.f32.partialorder %v271, -inf
  %vm288 = vcmp.ne.f32.partialorder %v272, -inf
  %vm289 = vcmp.ne.f32.partialorder %v273, -inf
  %vm290 = vcmp.ne.f32.partialorder %v274, -inf
  %vm291 = vcmp.ne.f32.partialorder %v275, -inf
  %v292 = vsel %vm276, %v260, 0.0
  %v293 = vsel %vm277, %v261, 0.0
  %v294 = vsel %vm278, %v262, 0.0
  %v295 = vsel %vm279, %v263, 0.0
  %v296 = vsel %vm280, %v264, 0.0
  %v297 = vsel %vm281, %v265, 0.0
  %v298 = vsel %vm282, %v266, 0.0
  %v299 = vsel %vm283, %v267, 0.0
  %v300 = vsel %vm284, %v268, 0.0
  %v301 = vsel %vm285, %v269, 0.0
  %v302 = vsel %vm286, %v270, 0.0
  %v303 = vsel %vm287, %v271, 0.0
  %v304 = vsel %vm288, %v272, 0.0
  %v305 = vsel %vm289, %v273, 0.0
  %v306 = vsel %vm290, %v274, 0.0
  %v307 = vsel %vm291, %v275, 0.0
  %v308 = vsub.f32 %v212, %v292
  %v309 = vsub.f32 %v213, %v293
  %v310 = vsub.f32 %v214, %v294
  %v311 = vsub.f32 %v215, %v295
  %v312 = vsub.f32 %v216, %v296
  %v313 = vsub.f32 %v217, %v297
  %v314 = vsub.f32 %v218, %v298
  %v315 = vsub.f32 %v219, %v299
  %v316 = vsub.f32 %v220, %v300
  %v317 = vsub.f32 %v221, %v301
  %v318 = vsub.f32 %v222, %v302
  %v319 = vsub.f32 %v223, %v303
  %v320 = vsub.f32 %v224, %v304
  %v321 = vsub.f32 %v225, %v305
  %v322 = vsub.f32 %v226, %v306
  %v323 = vsub.f32 %v227, %v307
  %v324 = vmul.f32 %v308, 1.442695
  %v325 = vpow.pop %v324
  %v326 = vmul.f32 %v309, 1.442695
  %v327 = vpow.pop %v326
  %v328 = vmul.f32 %v310, 1.442695
  %v329 = vpow.pop %v328
  %v330 = vmul.f32 %v311, 1.442695
  %v331 = vpow.pop %v330
  %v332 = vmul.f32 %v312, 1.442695
  %v333 = vpow.pop %v332
  %v334 = vmul.f32 %v313, 1.442695
  %v335 = vpow.pop %v334
  %v336 = vmul.f32 %v314, 1.442695
  %v337 = vpow.pop %v336
  %v338 = vmul.f32 %v315, 1.442695
  %v339 = vpow.pop %v338
  %v340 = vmul.f32 %v316, 1.442695
  %v341 = vpow.pop %v340
  %v342 = vmul.f32 %v317, 1.442695
  %v343 = vpow.pop %v342
  %v344 = vmul.f32 %v318, 1.442695
  %v345 = vpow.pop %v344
  %v346 = vmul.f32 %v319, 1.442695
  %v347 = vpow.pop %v346
  %v348 = vmul.f32 %v320, 1.442695
  %v349 = vpow.pop %v348
  %v350 = vmul.f32 %v321, 1.442695
  %v351 = vpow.pop %v350
  %v352 = vmul.f32 %v322, 1.442695
  %v353 = vpow.pop %v352
  %v354 = vmul.f32 %v323, 1.442695
  %v355 = vpow.pop %v354
  %357 = vset.pattern.permute.xlu0 0
  %358 = vperm.xlu0 %357, %v292
  %v359 = vpop.permute.xlu0 %358
  %362 = vset.pattern.permute.xlu0 0
  %363 = vperm.xlu0 %362, %v293
  %v364 = vpop.permute.xlu0 %363
  %367 = vset.pattern.permute.xlu0 0
  %368 = vperm.xlu0 %367, %v294
  %v369 = vpop.permute.xlu0 %368
  %372 = vset.pattern.permute.xlu0 0
  %373 = vperm.xlu0 %372, %v295
  %v374 = vpop.permute.xlu0 %373
  %377 = vset.pattern.permute.xlu0 0
  %378 = vperm.xlu0 %377, %v296
  %v379 = vpop.permute.xlu0 %378
  %382 = vset.pattern.permute.xlu0 0
  %383 = vperm.xlu0 %382, %v297
  %v384 = vpop.permute.xlu0 %383
  %387 = vset.pattern.permute.xlu0 0
  %388 = vperm.xlu0 %387, %v298
  %v389 = vpop.permute.xlu0 %388
  %392 = vset.pattern.permute.xlu0 0
  %393 = vperm.xlu0 %392, %v299
  %v394 = vpop.permute.xlu0 %393
  %397 = vset.pattern.permute.xlu0 0
  %398 = vperm.xlu0 %397, %v300
  %v399 = vpop.permute.xlu0 %398
  %402 = vset.pattern.permute.xlu0 0
  %403 = vperm.xlu0 %402, %v301
  %v404 = vpop.permute.xlu0 %403
  %407 = vset.pattern.permute.xlu0 0
  %408 = vperm.xlu0 %407, %v302
  %v409 = vpop.permute.xlu0 %408
  %412 = vset.pattern.permute.xlu0 0
  %413 = vperm.xlu0 %412, %v303
  %v414 = vpop.permute.xlu0 %413
  %417 = vset.pattern.permute.xlu0 0
  %418 = vperm.xlu0 %417, %v304
  %v419 = vpop.permute.xlu0 %418
  %422 = vset.pattern.permute.xlu0 0
  %423 = vperm.xlu0 %422, %v305
  %v424 = vpop.permute.xlu0 %423
  %427 = vset.pattern.permute.xlu0 0
  %428 = vperm.xlu0 %427, %v306
  %v429 = vpop.permute.xlu0 %428
  %432 = vset.pattern.permute.xlu0 0
  %433 = vperm.xlu0 %432, %v307
  %v434 = vpop.permute.xlu0 %433
  %v436 = vsub.f32 %v196, %v359
  %v437 = vsub.f32 %v197, %v364
  %v438 = vsub.f32 %v198, %v369
  %v439 = vsub.f32 %v199, %v374
  %v440 = vsub.f32 %v200, %v379
  %v441 = vsub.f32 %v201, %v384
  %v442 = vsub.f32 %v202, %v389
  %v443 = vsub.f32 %v203, %v394
  %v444 = vsub.f32 %v204, %v399
  %v445 = vsub.f32 %v205, %v404
  %v446 = vsub.f32 %v206, %v409
  %v447 = vsub.f32 %v207, %v414
  %v448 = vsub.f32 %v208, %v419
  %v449 = vsub.f32 %v209, %v424
  %v450 = vsub.f32 %v210, %v429
  %v451 = vsub.f32 %v211, %v434
  %v452 = vmul.f32 %v436, 1.442695
  %v453 = vpow.pop %v452
  %v454 = vmul.f32 %v437, 1.442695
  %v455 = vpow.pop %v454
  %v456 = vmul.f32 %v438, 1.442695
  %v457 = vpow.pop %v456
  %v458 = vmul.f32 %v439, 1.442695
  %v459 = vpow.pop %v458
  %v460 = vmul.f32 %v440, 1.442695
  %v461 = vpow.pop %v460
  %v462 = vmul.f32 %v441, 1.442695
  %v463 = vpow.pop %v462
  %v464 = vmul.f32 %v442, 1.442695
  %v465 = vpow.pop %v464
  %v466 = vmul.f32 %v443, 1.442695
  %v467 = vpow.pop %v466
  %v468 = vmul.f32 %v444, 1.442695
  %v469 = vpow.pop %v468
  %v470 = vmul.f32 %v445, 1.442695
  %v471 = vpow.pop %v470
  %v472 = vmul.f32 %v446, 1.442695
  %v473 = vpow.pop %v472
  %v474 = vmul.f32 %v447, 1.442695
  %v475 = vpow.pop %v474
  %v476 = vmul.f32 %v448, 1.442695
  %v477 = vpow.pop %v476
  %v478 = vmul.f32 %v449, 1.442695
  %v479 = vpow.pop %v478
  %v480 = vmul.f32 %v450, 1.442695
  %v481 = vpow.pop %v480
  %v482 = vmul.f32 %v451, 1.442695
  %v483 = vpow.pop %v482
  %v484 = vld [vmem:[#allocation3] sm:$0xff]
  %v485 = vld [vmem:[#allocation3 + $0x8] sm:$0xff]
  %v486 = vld [vmem:[#allocation3 + $0x10] sm:$0xff]
  %v487 = vld [vmem:[#allocation3 + $0x18] sm:$0xff]
  %v488 = vld [vmem:[#allocation3 + $0x20] sm:$0xff]
  %v489 = vld [vmem:[#allocation3 + $0x28] sm:$0xff]
  %v490 = vld [vmem:[#allocation3 + $0x30] sm:$0xff]
  %v491 = vld [vmem:[#allocation3 + $0x38] sm:$0xff]
  %v492 = vld [vmem:[#allocation3 + $0x40] sm:$0xff]
  %v493 = vld [vmem:[#allocation3 + $0x48] sm:$0xff]
  %v494 = vld [vmem:[#allocation3 + $0x50] sm:$0xff]
  %v495 = vld [vmem:[#allocation3 + $0x58] sm:$0xff]
  %v496 = vld [vmem:[#allocation3 + $0x60] sm:$0xff]
  %v497 = vld [vmem:[#allocation3 + $0x68] sm:$0xff]
  %v498 = vld [vmem:[#allocation3 + $0x70] sm:$0xff]
  %v499 = vld [vmem:[#allocation3 + $0x78] sm:$0xff]
  %v500 = vmul.f32 %v325, %v484
  %v501 = vmul.f32 %v327, %v485
  %v502 = vmul.f32 %v329, %v486
  %v503 = vmul.f32 %v331, %v487
  %v504 = vmul.f32 %v333, %v488
  %v505 = vmul.f32 %v335, %v489
  %v506 = vmul.f32 %v337, %v490
  %v507 = vmul.f32 %v339, %v491
  %v508 = vmul.f32 %v341, %v492
  %v509 = vmul.f32 %v343, %v493
  %v510 = vmul.f32 %v345, %v494
  %v511 = vmul.f32 %v347, %v495
  %v512 = vmul.f32 %v349, %v496
  %v513 = vmul.f32 %v351, %v497
  %v514 = vmul.f32 %v353, %v498
  %v515 = vmul.f32 %v355, %v499
  %516 = vadd.xlane.f32.xlu0 %v453
  %v517 = vpop.xlane.xlu0 %516
  %518 = vadd.xlane.f32.xlu0 %v455
  %v519 = vpop.xlane.xlu0 %518
  %520 = vadd.xlane.f32.xlu0 %v457
  %v521 = vpop.xlane.xlu0 %520
  %522 = vadd.xlane.f32.xlu0 %v459
  %v523 = vpop.xlane.xlu0 %522
  %524 = vadd.xlane.f32.xlu0 %v461
  %v525 = vpop.xlane.xlu0 %524
  %526 = vadd.xlane.f32.xlu0 %v463
  %v527 = vpop.xlane.xlu0 %526
  %528 = vadd.xlane.f32.xlu0 %v465
  %v529 = vpop.xlane.xlu0 %528
  %530 = vadd.xlane.f32.xlu0 %v467
  %v531 = vpop.xlane.xlu0 %530
  %532 = vadd.xlane.f32.xlu0 %v469
  %v533 = vpop.xlane.xlu0 %532
  %534 = vadd.xlane.f32.xlu0 %v471
  %v535 = vpop.xlane.xlu0 %534
  %536 = vadd.xlane.f32.xlu0 %v473
  %v537 = vpop.xlane.xlu0 %536
  %538 = vadd.xlane.f32.xlu0 %v475
  %v539 = vpop.xlane.xlu0 %538
  %540 = vadd.xlane.f32.xlu0 %v477
  %v541 = vpop.xlane.xlu0 %540
  %542 = vadd.xlane.f32.xlu0 %v479
  %v543 = vpop.xlane.xlu0 %542
  %544 = vadd.xlane.f32.xlu0 %v481
  %v545 = vpop.xlane.xlu0 %544
  %546 = vadd.xlane.f32.xlu0 %v483
  %v547 = vpop.xlane.xlu0 %546
  %v548 = vadd.f32 %v500, %v517
  %v549 = vadd.f32 %v501, %v519
  %v550 = vadd.f32 %v502, %v521
  %v551 = vadd.f32 %v503, %v523
  %v552 = vadd.f32 %v504, %v525
  %v553 = vadd.f32 %v505, %v527
  %v554 = vadd.f32 %v506, %v529
  %v555 = vadd.f32 %v507, %v531
  %v556 = vadd.f32 %v508, %v533
  %v557 = vadd.f32 %v509, %v535
  %v558 = vadd.f32 %v510, %v537
  %v559 = vadd.f32 %v511, %v539
  %v560 = vadd.f32 %v512, %v541
  %v561 = vadd.f32 %v513, %v543
  %v562 = vadd.f32 %v514, %v545
  %v563 = vadd.f32 %v515, %v547
  %vm564 = vcmask 7168
  %565 = vst.msk [vmem:[#allocation3] sm:$0xff] %vm564, %v548
  %566 = vst.msk [vmem:[#allocation3 + $0x8] sm:$0xff] %vm564, %v549
  %567 = vst.msk [vmem:[#allocation3 + $0x10] sm:$0xff] %vm564, %v550
  %568 = vst.msk [vmem:[#allocation3 + $0x18] sm:$0xff] %vm564, %v551
  %569 = vst.msk [vmem:[#allocation3 + $0x20] sm:$0xff] %vm564, %v552
  %570 = vst.msk [vmem:[#allocation3 + $0x28] sm:$0xff] %vm564, %v553
  %571 = vst.msk [vmem:[#allocation3 + $0x30] sm:$0xff] %vm564, %v554
  %572 = vst.msk [vmem:[#allocation3 + $0x38] sm:$0xff] %vm564, %v555
  %573 = vst.msk [vmem:[#allocation3 + $0x40] sm:$0xff] %vm564, %v556
  %574 = vst.msk [vmem:[#allocation3 + $0x48] sm:$0xff] %vm564, %v557
  %575 = vst.msk [vmem:[#allocation3 + $0x50] sm:$0xff] %vm564, %v558
  %576 = vst.msk [vmem:[#allocation3 + $0x58] sm:$0xff] %vm564, %v559
  %577 = vst.msk [vmem:[#allocation3 + $0x60] sm:$0xff] %vm564, %v560
  %578 = vst.msk [vmem:[#allocation3 + $0x68] sm:$0xff] %vm564, %v561
  %579 = vst.msk [vmem:[#allocation3 + $0x70] sm:$0xff] %vm564, %v562
  %580 = vst.msk [vmem:[#allocation3 + $0x78] sm:$0xff] %vm564, %v563
  %581 = vst.msk [vmem:[#allocation2] sm:$0xff] %vm564, %v260
  %582 = vst.msk [vmem:[#allocation2 + $0x8] sm:$0xff] %vm564, %v261
  %583 = vst.msk [vmem:[#allocation2 + $0x10] sm:$0xff] %vm564, %v262
  %584 = vst.msk [vmem:[#allocation2 + $0x18] sm:$0xff] %vm564, %v263
  %585 = vst.msk [vmem:[#allocation2 + $0x20] sm:$0xff] %vm564, %v264
  %586 = vst.msk [vmem:[#allocation2 + $0x28] sm:$0xff] %vm564, %v265
  %587 = vst.msk [vmem:[#allocation2 + $0x30] sm:$0xff] %vm564, %v266
  %588 = vst.msk [vmem:[#allocation2 + $0x38] sm:$0xff] %vm564, %v267
  %589 = vst.msk [vmem:[#allocation2 + $0x40] sm:$0xff] %vm564, %v268
  %590 = vst.msk [vmem:[#allocation2 + $0x48] sm:$0xff] %vm564, %v269
  %591 = vst.msk [vmem:[#allocation2 + $0x50] sm:$0xff] %vm564, %v270
  %592 = vst.msk [vmem:[#allocation2 + $0x58] sm:$0xff] %vm564, %v271
  %593 = vst.msk [vmem:[#allocation2 + $0x60] sm:$0xff] %vm564, %v272
  %594 = vst.msk [vmem:[#allocation2 + $0x68] sm:$0xff] %vm564, %v273
  %595 = vst.msk [vmem:[#allocation2 + $0x70] sm:$0xff] %vm564, %v274
  %596 = vst.msk [vmem:[#allocation2 + $0x78] sm:$0xff] %vm564, %v275
  // Predicated region
  $region22: #{tpu_custom_call.1} parent=0 // pred_check
    %p597 = pneg %p19
  $region23: #{tpu_custom_call.1} parent=0 // pred_check_branch
    %599 = sbr.rel (%p597) target = $region25
  $region24: #{tpu_custom_call.1} parent=0 // pred_region
    %v600 = vld [vmem:[%s3] sm:$0xff]
    %v601 = vld [vmem:[%s3 + $0x8] sm:$0xff]
    %v602 = vld [vmem:[%s3 + $0x10] sm:$0xff]
    %v603 = vld [vmem:[%s3 + $0x18] sm:$0xff]
    %v604 = vld [vmem:[%s3 + $0x20] sm:$0xff]
    %v605 = vld [vmem:[%s3 + $0x28] sm:$0xff]
    %v606 = vld [vmem:[%s3 + $0x30] sm:$0xff]
    %v607 = vld [vmem:[%s3 + $0x38] sm:$0xff]
    %v608 = vld [vmem:[%s3 + $0x40] sm:$0xff]
    %v609 = vld [vmem:[%s3 + $0x48] sm:$0xff]
    %v610 = vld [vmem:[%s3 + $0x50] sm:$0xff]
    %v611 = vld [vmem:[%s3 + $0x58] sm:$0xff]
    %v612 = vld [vmem:[%s3 + $0x60] sm:$0xff]
    %v613 = vld [vmem:[%s3 + $0x68] sm:$0xff]
    %v614 = vld [vmem:[%s3 + $0x70] sm:$0xff]
    %v615 = vld [vmem:[%s3 + $0x78] sm:$0xff]
    %v616 = vld [vmem:[#allocation2] sm:$0xff]
    %v617 = vld [vmem:[#allocation2 + $0x8] sm:$0xff]
    %v618 = vld [vmem:[#allocation2 + $0x10] sm:$0xff]
    %v619 = vld [vmem:[#allocation2 + $0x18] sm:$0xff]
    %v620 = vld [vmem:[#allocation2 + $0x20] sm:$0xff]
    %v621 = vld [vmem:[#allocation2 + $0x28] sm:$0xff]
    %v622 = vld [vmem:[#allocation2 + $0x30] sm:$0xff]
    %v623 = vld [vmem:[#allocation2 + $0x38] sm:$0xff]
    %v624 = vld [vmem:[#allocation2 + $0x40] sm:$0xff]
    %v625 = vld [vmem:[#allocation2 + $0x48] sm:$0xff]
    %v626 = vld [vmem:[#allocation2 + $0x50] sm:$0xff]
    %v627 = vld [vmem:[#allocation2 + $0x58] sm:$0xff]
    %v628 = vld [vmem:[#allocation2 + $0x60] sm:$0xff]
    %v629 = vld [vmem:[#allocation2 + $0x68] sm:$0xff]
    %v630 = vld [vmem:[#allocation2 + $0x70] sm:$0xff]
    %v631 = vld [vmem:[#allocation2 + $0x78] sm:$0xff]
    %v632 = vld [vmem:[#allocation3] sm:$0xff]
    %v633 = vld [vmem:[#allocation3 + $0x8] sm:$0xff]
    %v634 = vld [vmem:[#allocation3 + $0x10] sm:$0xff]
    %v635 = vld [vmem:[#allocation3 + $0x18] sm:$0xff]
    %v636 = vld [vmem:[#allocation3 + $0x20] sm:$0xff]
    %v637 = vld [vmem:[#allocation3 + $0x28] sm:$0xff]
    %v638 = vld [vmem:[#allocation3 + $0x30] sm:$0xff]
    %v639 = vld [vmem:[#allocation3 + $0x38] sm:$0xff]
    %v640 = vld [vmem:[#allocation3 + $0x40] sm:$0xff]
    %v641 = vld [vmem:[#allocation3 + $0x48] sm:$0xff]
    %v642 = vld [vmem:[#allocation3 + $0x50] sm:$0xff]
    %v643 = vld [vmem:[#allocation3 + $0x58] sm:$0xff]
    %v644 = vld [vmem:[#allocation3 + $0x60] sm:$0xff]
    %v645 = vld [vmem:[#allocation3 + $0x68] sm:$0xff]
    %v646 = vld [vmem:[#allocation3 + $0x70] sm:$0xff]
    %v647 = vld [vmem:[#allocation3 + $0x78] sm:$0xff]
    %v648 = vlog2.pop %v632
    %v649 = vmul.f32 %v648, 0.6931472
    %v650 = vlog2.pop %v633
    %v651 = vmul.f32 %v650, 0.6931472
    %v652 = vlog2.pop %v634
    %v653 = vmul.f32 %v652, 0.6931472
    %v654 = vlog2.pop %v635
    %v655 = vmul.f32 %v654, 0.6931472
    %v656 = vlog2.pop %v636
    %v657 = vmul.f32 %v656, 0.6931472
    %v658 = vlog2.pop %v637
    %v659 = vmul.f32 %v658, 0.6931472
    %v660 = vlog2.pop %v638
    %v661 = vmul.f32 %v660, 0.6931472
    %v662 = vlog2.pop %v639
    %v663 = vmul.f32 %v662, 0.6931472
    %v664 = vlog2.pop %v640
    %v665 = vmul.f32 %v664, 0.6931472
    %v666 = vlog2.pop %v641
    %v667 = vmul.f32 %v666, 0.6931472
    %v668 = vlog2.pop %v642
    %v669 = vmul.f32 %v668, 0.6931472
    %v670 = vlog2.pop %v643
    %v671 = vmul.f32 %v670, 0.6931472
    %v672 = vlog2.pop %v644
    %v673 = vmul.f32 %v672, 0.6931472
    %v674 = vlog2.pop %v645
    %v675 = vmul.f32 %v674, 0.6931472
    %v676 = vlog2.pop %v646
    %v677 = vmul.f32 %v676, 0.6931472
    %v678 = vlog2.pop %v647
    %v679 = vmul.f32 %v678, 0.6931472
    %v680 = vadd.f32 %v616, %v649
    %v681 = vadd.f32 %v617, %v651
    %v682 = vadd.f32 %v618, %v653
    %v683 = vadd.f32 %v619, %v655
    %v684 = vadd.f32 %v620, %v657
    %v685 = vadd.f32 %v621, %v659
    %v686 = vadd.f32 %v622, %v661
    %v687 = vadd.f32 %v623, %v663
    %v688 = vadd.f32 %v624, %v665
    %v689 = vadd.f32 %v625, %v667
    %v690 = vadd.f32 %v626, %v669
    %v691 = vadd.f32 %v627, %v671
    %v692 = vadd.f32 %v628, %v673
    %v693 = vadd.f32 %v629, %v675
    %v694 = vadd.f32 %v630, %v677
    %v695 = vadd.f32 %v631, %v679
    %vm696 = vcmp.ne.f32.partialorder %v600, 0.0
    %vm697 = vcmp.ne.f32.partialorder %v601, 0.0
    %vm698 = vcmp.ne.f32.partialorder %v602, 0.0
    %vm699 = vcmp.ne.f32.partialorder %v603, 0.0
    %vm700 = vcmp.ne.f32.partialorder %v604, 0.0
    %vm701 = vcmp.ne.f32.partialorder %v605, 0.0
    %vm702 = vcmp.ne.f32.partialorder %v606, 0.0
    %vm703 = vcmp.ne.f32.partialorder %v607, 0.0
    %vm704 = vcmp.ne.f32.partialorder %v608, 0.0
    %vm705 = vcmp.ne.f32.partialorder %v609, 0.0
    %vm706 = vcmp.ne.f32.partialorder %v610, 0.0
    %vm707 = vcmp.ne.f32.partialorder %v611, 0.0
    %vm708 = vcmp.ne.f32.partialorder %v612, 0.0
    %vm709 = vcmp.ne.f32.partialorder %v613, 0.0
    %vm710 = vcmp.ne.f32.partialorder %v614, 0.0
    %vm711 = vcmp.ne.f32.partialorder %v615, 0.0
    %v712 = vld [vmem:[%s2] sm:$0xff]
    %v713 = vld [vmem:[%s2 + $0x8] sm:$0xff]
    %v714 = vld [vmem:[%s2 + $0x10] sm:$0xff]
    %v715 = vld [vmem:[%s2 + $0x18] sm:$0xff]
    %v716 = vld [vmem:[%s2 + $0x20] sm:$0xff]
    %v717 = vld [vmem:[%s2 + $0x28] sm:$0xff]
    %v718 = vld [vmem:[%s2 + $0x30] sm:$0xff]
    %v719 = vld [vmem:[%s2 + $0x38] sm:$0xff]
    %v720 = vld [vmem:[%s2 + $0x40] sm:$0xff]
    %v721 = vld [vmem:[%s2 + $0x48] sm:$0xff]
    %v722 = vld [vmem:[%s2 + $0x50] sm:$0xff]
    %v723 = vld [vmem:[%s2 + $0x58] sm:$0xff]
    %v724 = vld [vmem:[%s2 + $0x60] sm:$0xff]
    %v725 = vld [vmem:[%s2 + $0x68] sm:$0xff]
    %v726 = vld [vmem:[%s2 + $0x70] sm:$0xff]
    %v727 = vld [vmem:[%s2 + $0x78] sm:$0xff]
    %v728 = vsub.f32 %v712, %v680
    %v729 = vsub.f32 %v713, %v681
    %v730 = vsub.f32 %v714, %v682
    %v731 = vsub.f32 %v715, %v683
    %v732 = vsub.f32 %v716, %v684
    %v733 = vsub.f32 %v717, %v685
    %v734 = vsub.f32 %v718, %v686
    %v735 = vsub.f32 %v719, %v687
    %v736 = vsub.f32 %v720, %v688
    %v737 = vsub.f32 %v721, %v689
    %v738 = vsub.f32 %v722, %v690
    %v739 = vsub.f32 %v723, %v691
    %v740 = vsub.f32 %v724, %v692
    %v741 = vsub.f32 %v725, %v693
    %v742 = vsub.f32 %v726, %v694
    %v743 = vsub.f32 %v727, %v695
    %v744 = vmul.f32 %v728, %v600
    %v745 = vmul.f32 %v729, %v601
    %v746 = vmul.f32 %v730, %v602
    %v747 = vmul.f32 %v731, %v603
    %v748 = vmul.f32 %v732, %v604
    %v749 = vmul.f32 %v733, %v605
    %v750 = vmul.f32 %v734, %v606
    %v751 = vmul.f32 %v735, %v607
    %v752 = vmul.f32 %v736, %v608
    %v753 = vmul.f32 %v737, %v609
    %v754 = vmul.f32 %v738, %v610
    %v755 = vmul.f32 %v739, %v611
    %v756 = vmul.f32 %v740, %v612
    %v757 = vmul.f32 %v741, %v613
    %v758 = vmul.f32 %v742, %v614
    %v759 = vmul.f32 %v743, %v615
    %v760 = vsel %vm696, %v744, 0.0
    %v761 = vsel %vm697, %v745, 0.0
    %v762 = vsel %vm698, %v746, 0.0
    %v763 = vsel %vm699, %v747, 0.0
    %v764 = vsel %vm700, %v748, 0.0
    %v765 = vsel %vm701, %v749, 0.0
    %v766 = vsel %vm702, %v750, 0.0
    %v767 = vsel %vm703, %v751, 0.0
    %v768 = vsel %vm704, %v752, 0.0
    %v769 = vsel %vm705, %v753, 0.0
    %v770 = vsel %vm706, %v754, 0.0
    %v771 = vsel %vm707, %v755, 0.0
    %v772 = vsel %vm708, %v756, 0.0
    %v773 = vsel %vm709, %v757, 0.0
    %v774 = vsel %vm710, %v758, 0.0
    %v775 = vsel %vm711, %v759, 0.0
    %776 = vst.msk [vmem:[%s4] sm:$0xff] %vm564, %v760
    %777 = vst.msk [vmem:[%s4 + $0x8] sm:$0xff] %vm564, %v761
    %778 = vst.msk [vmem:[%s4 + $0x10] sm:$0xff] %vm564, %v762
    %779 = vst.msk [vmem:[%s4 + $0x18] sm:$0xff] %vm564, %v763
    %780 = vst.msk [vmem:[%s4 + $0x20] sm:$0xff] %vm564, %v764
    %781 = vst.msk [vmem:[%s4 + $0x28] sm:$0xff] %vm564, %v765
    %782 = vst.msk [vmem:[%s4 + $0x30] sm:$0xff] %vm564, %v766
    %783 = vst.msk [vmem:[%s4 + $0x38] sm:$0xff] %vm564, %v767
    %784 = vst.msk [vmem:[%s4 + $0x40] sm:$0xff] %vm564, %v768
    %785 = vst.msk [vmem:[%s4 + $0x48] sm:$0xff] %vm564, %v769
    %786 = vst.msk [vmem:[%s4 + $0x50] sm:$0xff] %vm564, %v770
    %787 = vst.msk [vmem:[%s4 + $0x58] sm:$0xff] %vm564, %v771
    %788 = vst.msk [vmem:[%s4 + $0x60] sm:$0xff] %vm564, %v772
    %789 = vst.msk [vmem:[%s4 + $0x68] sm:$0xff] %vm564, %v773
    %790 = vst.msk [vmem:[%s4 + $0x70] sm:$0xff] %vm564, %v774
    %791 = vst.msk [vmem:[%s4 + $0x78] sm:$0xff] %vm564, %v775
  $region25: #{tpu_custom_call.1} parent=0 // pred_fallthru
    _
  // Predicated region
  $region26: #{tpu_custom_call.1} parent=0 // pred_check
    _
  $region27: #{tpu_custom_call.1} parent=0 // pred_check_branch
    %793 = sbr.rel (0) target = $region29
  $region28: #{tpu_custom_call.1} parent=0 // pred_region
    _
  $region29: #{tpu_custom_call.1} parent=0 // pred_fallthru
    _
  // Predicated region
  $region30: #{tpu_custom_call.1} parent=0 // pred_check
    _
  $region31: #{tpu_custom_call.1} parent=0 // pred_check_branch
    %795 = sbr.rel (0) target = $region33
  $region32: #{tpu_custom_call.1} parent=0 // pred_region
    _
  $region33: #{tpu_custom_call.1} parent=0 // pred_fallthru
    _

</llo_original>
